<compile_context>
chip_gen: v5e
topology: v5e:2x2
jax: 0.10.0
libtpu: 0.0.40
codegen_flags: <defaults>
</compile_context>

<pallas_src>
import functools

import jax
import jax.numpy as jnp
from jax.experimental import pallas as pl
from jax.experimental.pallas import tpu as pltpu


def _round_up(x, n):
    return ((x + n - 1) // n) * n


def _qwen_mlp_kernel(x_ref, w12_ref, b12_ref, wp_ref, bp_ref, o_ref, acc_ref,
                     *, tf):
    """Fused gated-MLP kernel.

    Grid: (M tiles, FFN tiles).  The FFN axis is a reduction for the c_proj
    matmul, so the output block stays resident across it (f32 VMEM
    accumulator), initialized at f==0 and finalized (+ bias, cast) at the
    last f step.
    """
    f = pl.program_id(1)

    @pl.when(f == 0)
    def _():
        acc_ref[...] = jnp.zeros_like(acc_ref)

    x = x_ref[...]                                         # (tm, H)  bf16
    # Single fused first-stage matmul: (tm, H) @ (H, 2*tf) -> (tm, 2*tf) f32.
    a12 = jnp.dot(x, w12_ref[...],
                  preferred_element_type=jnp.float32) + b12_ref[...]
    a1 = a12[:, :tf]                                       # gate input
    a2 = a12[:, tf:]                                       # silu input
    gated = a1 * (a2 * jax.nn.sigmoid(a2))                 # (tm, tf) f32

    acc_ref[...] += jnp.dot(gated.astype(wp_ref.dtype), wp_ref[...],
                            preferred_element_type=jnp.float32)

    @pl.when(f == pl.num_programs(1) - 1)
    def _():
        o_ref[...] = (acc_ref[...] + bp_ref[...]).astype(o_ref.dtype)


@functools.partial(jax.jit, static_argnames=("tm", "tf", "compute_dtype"))
def qwen_mlp(x, w1, b1, w2, b2, wp, bp, *, tm=256, tf=512,
             compute_dtype=jnp.bfloat16):
    """x: [batch, seq, hidden]. Weights are [in, out]; biases [1, out].

    tm/tf defaults target v6e/v7x (tm=256, tf=512); on v7x with very large
    hidden sizes use tf=256 to stay inside 64 MiB VMEM.  Small shapes are
    handled by clamping the tiles and zero-padding M / FFN.
    """
    batch, seq, hidden = x.shape
    ffn = w1.shape[1]
    m = batch * seq

    tm = _round_up(tm, 8)
    tf = _round_up(tf, 128)

    # Clamp tiles to (padded) problem size, then pad to tile multiples.
    tm_eff = min(tm, _round_up(m, 8))
    m_pad = _round_up(m, tm_eff)
    tf_eff = min(tf, _round_up(ffn, 128))
    ffn_pad = _round_up(ffn, tf_eff)
    n_f = ffn_pad // tf_eff

    cd = compute_dtype
    x2d = x.reshape(m, hidden).astype(cd)
    if m_pad != m:
        x2d = jnp.pad(x2d, ((0, m_pad - m), (0, 0)))

    def pad_cols(a):
        return jnp.pad(a, ((0, 0), (0, ffn_pad - ffn))) if ffn_pad != ffn else a

    w1p = pad_cols(w1).astype(cd)
    w2p = pad_cols(w2).astype(cd)
    b1p = pad_cols(b1).astype(jnp.float32)
    b2p = pad_cols(b2).astype(jnp.float32)
    wpp = wp if ffn_pad == ffn else jnp.pad(wp, ((0, ffn_pad - ffn), (0, 0)))
    wpp = wpp.astype(cd)
    bpf = bp.astype(jnp.float32)

    # Fuse gate/up weights at tile granularity: for each FFN tile f the w1
    # slice is immediately followed by the matching w2 slice, so the kernel
    # streams one contiguous (H, 2*tf) weight block per grid step.
    w12 = jnp.concatenate(
        [w1p.reshape(hidden, n_f, tf_eff), w2p.reshape(hidden, n_f, tf_eff)],
        axis=2).reshape(hidden, n_f * 2 * tf_eff)
    b12 = jnp.concatenate(
        [b1p.reshape(1, n_f, tf_eff), b2p.reshape(1, n_f, tf_eff)],
        axis=2).reshape(1, n_f * 2 * tf_eff)

    cost = pl.CostEstimate(
        flops=6 * m * hidden * ffn,                # 2*m*H*2F + 2*m*F*H
        transcendentals=m * ffn,                   # sigmoid in silu
        bytes_accessed=(x2d.size * 2 + w12.size + wpp.size) * 2
                       + m_pad * hidden * x.dtype.itemsize,
    )

    out2d = pl.pallas_call(
        functools.partial(_qwen_mlp_kernel, tf=tf_eff),
        out_shape=jax.ShapeDtypeStruct((m_pad, hidden), x.dtype),
        grid_spec=pltpu.PrefetchScalarGridSpec(
            num_scalar_prefetch=0,
            grid=(m_pad // tm_eff, n_f),
            in_specs=[
                pl.BlockSpec((tm_eff, hidden),     lambda i, f: (i, 0)),  # x
                pl.BlockSpec((hidden, 2 * tf_eff), lambda i, f: (0, f)),  # W1|W2
                pl.BlockSpec((1, 2 * tf_eff),      lambda i, f: (0, f)),  # b1|b2
                pl.BlockSpec((tf_eff, hidden),     lambda i, f: (f, 0)),  # Wp
                pl.BlockSpec((1, hidden),          lambda i, f: (0, 0)),  # bp
            ],
            out_specs=pl.BlockSpec((tm_eff, hidden), lambda i, f: (i, 0)),
            scratch_shapes=[pltpu.VMEM((tm_eff, hidden), jnp.float32)],
        ),
        compiler_params=pltpu.CompilerParams(
            dimension_semantics=("parallel", "arbitrary"),
            vmem_limit_bytes=48 * 1024 * 1024),
        cost_estimate=cost,
    )(x2d, w12, b12, wpp, bpf)

    if m_pad != m:
        out2d = out2d[:m]
    return out2d.reshape(batch, seq, hidden)


def qwen_mlp_reference(x, w1, b1, w2, b2, wp, bp):
    a1 = jnp.einsum("bsh,hf->bsf", x, w1) + b1[0]
    a2 = jnp.einsum("bsh,hf->bsf", x, w2) + b2[0]
    h = a1 * jax.nn.silu(a2)
    return jnp.einsum("bsf,fh->bsh", h, wp) + bp[0]


if __name__ == "__main__":
    # Small, TPU-tile-friendly shapes: batch=2, seq=8, hidden=128, ffn=256.
    batch, seq, hidden, ffn = 2, 8, 128, 256
    dtype = jnp.float32

    key = jax.random.PRNGKey(0)
    kx, k1, kb1, k2, kb2, kp, kbp = jax.random.split(key, 7)

    x = jax.random.normal(kx, (batch, seq, hidden), dtype)
    # Deterministic synthetic parameters (stored as [in, out]).
    w1 = jax.random.normal(k1, (hidden, ffn), dtype) * 0.02
    b1 = jax.random.normal(kb1, (1, ffn), dtype) * 0.02
    w2 = jax.random.normal(k2, (hidden, ffn), dtype) * 0.02
    b2 = jax.random.normal(kb2, (1, ffn), dtype) * 0.02
    wp = jax.random.normal(kp, (ffn, hidden), dtype) * 0.02
    bp = jax.random.normal(kbp, (1, hidden), dtype) * 0.02

    out = qwen_mlp(x, w1, b1, w2, b2, wp, bp)
    out = jax.block_until_ready(out)

    ref = qwen_mlp_reference(x, w1, b1, w2, b2, wp, bp)
    assert out.shape == (batch, seq, hidden)
    # bf16 matmuls with f32 accumulation -> loosen tolerance vs f32 reference.
    assert jnp.allclose(out, ref, atol=2e-2, rtol=2e-2)

    print("KERNEL_OK")
</pallas_src>

<mosaic_0001>
module attributes {stable_mosaic.version = 11 : i64} {
  func.func @_qwen_mlp_kernel(%arg0: i32, %arg1: i32, %arg2: memref<16x128xbf16, #tpu.memory_space<vmem>>, %arg3: memref<128x512xbf16, #tpu.memory_space<vmem>>, %arg4: memref<1x512xf32, #tpu.memory_space<vmem>>, %arg5: memref<256x128xbf16, #tpu.memory_space<vmem>>, %arg6: memref<1x128xf32, #tpu.memory_space<vmem>>, %arg7: memref<16x128xf32, #tpu.memory_space<vmem>>, %arg8: memref<16x128xf32, #tpu.memory_space<vmem>>) attributes {dimension_semantics = [#tpu.dimension_semantics<parallel>, #tpu.dimension_semantics<arbitrary>], iteration_bounds = array<i64: 1, 1>, scalar_prefetch = 0 : i64, scratch_operands = 1 : i64, tpu.core_type = #tpu.core_type<tc>, window_params = [{transform_indices = @transform_0, window_bounds = array<i64: 16, 128>}, {transform_indices = @transform_1, window_bounds = array<i64: 128, 512>}, {transform_indices = @transform_2, window_bounds = array<i64: 1, 512>}, {transform_indices = @transform_3, window_bounds = array<i64: 256, 128>}, {pipeline_mode = #tpu.pipeline_mode<synchronous>, transform_indices = @transform_4, window_bounds = array<i64: 1, 128>}, {transform_indices = @transform_5, window_bounds = array<i64: 16, 128>}]} {
    %c0_i32 = arith.constant 0 : i32
    %0 = arith.cmpi eq, %arg1, %c0_i32 : i32
    %1 = arith.extui %0 : i1 to i32
    %c0_i32_0 = arith.constant 0 : i32
    %2 = arith.cmpi ne, %1, %c0_i32_0 : i32
    scf.if %2 {
      %cst_16 = arith.constant 0.000000e+00 : f32
      %27 = vector.broadcast %cst_16 : f32 to vector<16x128xf32>
      %c0_17 = arith.constant 0 : index
      %c0_18 = arith.constant 0 : index
      %28 = vector.load %arg8[%c0_17, %c0_18] : memref<16x128xf32, #tpu.memory_space<vmem>>, vector<16x128xf32>
      tpu.vector_store %arg8[%c0_17, %c0_18], %27 {strides = array<i32>} : memref<16x128xf32, #tpu.memory_space<vmem>>, vector<16x128xf32>,
    } else {
    }
    %c0 = arith.constant 0 : index
    %c0_1 = arith.constant 0 : index
    %3 = vector.load %arg2[%c0, %c0_1] : memref<16x128xbf16, #tpu.memory_space<vmem>>, vector<16x128xbf16>
    %c0_2 = arith.constant 0 : index
    %c0_3 = arith.constant 0 : index
    %4 = vector.load %arg3[%c0_2, %c0_3] : memref<128x512xbf16, #tpu.memory_space<vmem>>, vector<128x512xbf16>
    %cst = arith.constant dense<0.000000e+00> : vector<16x512xf32>
    %5 = tpu.matmul %3, %4, %cst {dimension_numbers = #tpu.dot_dimension_numbers<[1], [0], [0], [1], [0, 0, 1, 1], [], []>} : vector<16x128xbf16>, vector<128x512xbf16>, vector<16x512xf32> -> vector<16x512xf32>
    %c0_4 = arith.constant 0 : index
    %c0_5 = arith.constant 0 : index
    %6 = vector.load %arg4[%c0_4, %c0_5] : memref<1x512xf32, #tpu.memory_space<vmem>>, vector<1x512xf32>
    %7 = vector.broadcast %6 : vector<1x512xf32> to vector<16x512xf32>
    %8 = arith.addf %5, %7 : vector<16x512xf32>
    %9 = vector.extract_strided_slice %8 {offsets = [0, 0], sizes = [16, 256], strides = [1, 1]} : vector<16x512xf32> to vector<16x256xf32>
    %10 = vector.extract_strided_slice %8 {offsets = [0, 256], sizes = [16, 256], strides = [1, 1]} : vector<16x512xf32> to vector<16x256xf32>
    %11 = arith.negf %10 : vector<16x256xf32>
    %12 = math.exp %11 : vector<16x256xf32>
    %cst_6 = arith.constant 1.000000e+00 : f32
    %13 = vector.broadcast %cst_6 : f32 to vector<16x256xf32>
    %14 = arith.addf %13, %12 : vector<16x256xf32>
    %15 = arith.divf %13, %14 : vector<16x256xf32>
    %16 = arith.mulf %10, %15 : vector<16x256xf32>
    %17 = arith.mulf %9, %16 : vector<16x256xf32>
    %c0_7 = arith.constant 0 : index
    %c0_8 = arith.constant 0 : index
    %18 = vector.load %arg8[%c0_7, %c0_8] : memref<16x128xf32, #tpu.memory_space<vmem>>, vector<16x128xf32>
    %19 = arith.truncf %17 : vector<16x256xf32> to vector<16x256xbf16>
    %c0_9 = arith.constant 0 : index
    %c0_10 = arith.constant 0 : index
    %20 = vector.load %arg5[%c0_9, %c0_10] : memref<256x128xbf16, #tpu.memory_space<vmem>>, vector<256x128xbf16>
    %cst_11 = arith.constant dense<0.000000e+00> : vector<16x128xf32>
    %21 = tpu.matmul %19, %20, %cst_11 {dimension_numbers = #tpu.dot_dimension_numbers<[1], [0], [0], [1], [0, 0, 1, 1], [], []>} : vector<16x256xbf16>, vector<256x128xbf16>, vector<16x128xf32> -> vector<16x128xf32>
    %22 = arith.addf %18, %21 : vector<16x128xf32>
    %c0_12 = arith.constant 0 : index
    %c0_13 = arith.constant 0 : index
    %23 = vector.load %arg8[%c0_12, %c0_13] : memref<16x128xf32, #tpu.memory_space<vmem>>, vector<16x128xf32>
    tpu.vector_store %arg8[%c0_12, %c0_13], %22 {strides = array<i32>} : memref<16x128xf32, #tpu.memory_space<vmem>>, vector<16x128xf32>,
    %c0_i32_14 = arith.constant 0 : i32
    %24 = arith.cmpi eq, %arg1, %c0_i32_14 : i32
    %25 = arith.extui %24 : i1 to i32
    %c0_i32_15 = arith.constant 0 : i32
    %26 = arith.cmpi ne, %25, %c0_i32_15 : i32
    scf.if %26 {
      %c0_16 = arith.constant 0 : index
      %c0_17 = arith.constant 0 : index
      %27 = vector.load %arg8[%c0_16, %c0_17] : memref<16x128xf32, #tpu.memory_space<vmem>>, vector<16x128xf32>
      %c0_18 = arith.constant 0 : index
      %c0_19 = arith.constant 0 : index
      %28 = vector.load %arg6[%c0_18, %c0_19] : memref<1x128xf32, #tpu.memory_space<vmem>>, vector<1x128xf32>
      %29 = vector.broadcast %28 : vector<1x128xf32> to vector<16x128xf32>
      %30 = arith.addf %27, %29 : vector<16x128xf32>
      %c0_20 = arith.constant 0 : index
      %c0_21 = arith.constant 0 : index
      %31 = vector.load %arg7[%c0_20, %c0_21] : memref<16x128xf32, #tpu.memory_space<vmem>>, vector<16x128xf32>
      tpu.vector_store %arg7[%c0_20, %c0_21], %30 {strides = array<i32>} : memref<16x128xf32, #tpu.memory_space<vmem>>, vector<16x128xf32>,
    } else {
    }
    return
  }
  func.func @transform_0(%arg0: i32, %arg1: i32) -> (i32, i32) {
    %c0_i32 = arith.constant 0 : i32
    %c0_i32_0 = arith.constant 0 : i32
    return %arg0, %c0_i32 : i32, i32
  }
  func.func @transform_1(%arg0: i32, %arg1: i32) -> (i32, i32) {
    %c0_i32 = arith.constant 0 : i32
    %c0_i32_0 = arith.constant 0 : i32
    return %c0_i32, %arg1 : i32, i32
  }
  func.func @transform_2(%arg0: i32, %arg1: i32) -> (i32, i32) {
    %c0_i32 = arith.constant 0 : i32
    %c0_i32_0 = arith.constant 0 : i32
    return %c0_i32, %arg1 : i32, i32
  }
  func.func @transform_3(%arg0: i32, %arg1: i32) -> (i32, i32) {
    %c0_i32 = arith.constant 0 : i32
    %c0_i32_0 = arith.constant 0 : i32
    return %arg1, %c0_i32 : i32, i32
  }
  func.func @transform_4(%arg0: i32, %arg1: i32) -> (i32, i32) {
    %c0_i32 = arith.constant 0 : i32
    %c0_i32_0 = arith.constant 0 : i32
    %c0_i32_1 = arith.constant 0 : i32
    return %c0_i32, %c0_i32_0 : i32, i32
  }
  func.func @transform_5(%arg0: i32, %arg1: i32) -> (i32, i32) {
    %c0_i32 = arith.constant 0 : i32
    %c0_i32_0 = arith.constant 0 : i32
    return %arg0, %c0_i32 : i32, i32
  }
}

</mosaic_0001>

<llo_original>
// kernel: qwen_mlp.1
$region0: #{qwen_mlp.1}
  #allocation0 [shape = 'u32[]', space=smem, size = 0x4, offset = 0x4, fixed_abs, tag = 'smem constant byte address 0x4 - core index']
  #allocation1 [shape = 'u32[72,128]{1,0:T(1,128)}', space=vmem, size = 0x9000, scoped, tag = 'internal scratch']
  #allocation2 [shape = 'f32[16,128]{1,0:T(8,128)}', space=vmem, size = 0x2000, scoped, tag = 'scratch operand']
  %s0 = inlined_call_operand.vmem [shape: bf16[16,128], index: 0, kind: input, shape index: {}]
  %s1 = inlined_call_operand.vmem [shape: bf16[128,512], index: 1, kind: input, shape index: {}]
  %s2 = inlined_call_operand.vmem [shape: f32[1,512], index: 2, kind: input, shape index: {}]
  %s3 = inlined_call_operand.vmem [shape: bf16[256,128], index: 3, kind: input, shape index: {}]
  %s4 = inlined_call_operand.vmem [shape: f32[1,128], index: 4, kind: input, shape index: {}]
  %s5 = inlined_call_operand.hbm [shape: f32[16,128], index: 5, kind: output, shape index: {}]
  %s6 = sld [smem:[#allocation0]]
  $region38: #{qwen_mlp.1} parent=0
    _
  %s8 = ssub.s32 1, %s6
  %s9 = scalar_select 0, %s8, %s6
  $region1: #{qwen_mlp.1} parent=0
    #allocation3 [shape = 'u8[8192]{0}', space=vmem, size = 0x2000, scoped, tag = 'output window, operand 0, single buffered']
    #allocation4 [shape = 's32[1]{0}', space=sflag, size = 0x4, scoped, tag = 'scoped memory for qwen_mlp.1']
    %10 = vsyncpa [#allocation4], 0
    // Predicated region
    $region2: #{qwen_mlp.1} parent=1 // pred_check
      _
    $region3: #{qwen_mlp.1} parent=1 // pred_check_branch
      %12 = sbr.rel (0) target = $region5
    $region4: #{qwen_mlp.1} parent=1 // pred_region
      _
    $region5: #{qwen_mlp.1} parent=1 // pred_fallthru
      _
    // Predicated region
    $region6: #{qwen_mlp.1} parent=1 // pred_check
      _
    $region7: #{qwen_mlp.1} parent=1 // pred_check_branch
      %14 = sbr.rel (0) target = $region9
    $region8: #{qwen_mlp.1} parent=1 // pred_region
      _
    $region9: #{qwen_mlp.1} parent=1 // pred_fallthru
      _
    // Predicated region
    $region10: #{qwen_mlp.1} parent=1 // pred_check
      _
    $region11: #{qwen_mlp.1} parent=1 // pred_check_branch
      %16 = sbr.rel (0) target = $region13
    $region12: #{qwen_mlp.1} parent=1 // pred_region
      _
    $region13: #{qwen_mlp.1} parent=1 // pred_fallthru
      _
    // Predicated region
    $region14: #{qwen_mlp.1} parent=1 // pred_check
      _
    $region15: #{qwen_mlp.1} parent=1 // pred_check_branch
      %18 = sbr.rel (0) target = $region17
    $region16: #{qwen_mlp.1} parent=1 // pred_region
      _
    $region17: #{qwen_mlp.1} parent=1 // pred_fallthru
      _
    // Predicated region
    $region18: #{qwen_mlp.1} parent=1 // pred_check
      _
    $region19: #{qwen_mlp.1} parent=1 // pred_check_branch
      %20 = sbr.rel (0) target = $region21
    $region20: #{qwen_mlp.1} parent=1 // pred_region
      _
    $region21: #{qwen_mlp.1} parent=1 // pred_fallthru
      _
    %p21 = scmp.eq.s32.totalorder 0, 0
    // Predicated region
    $region22: #{qwen_mlp.1} parent=1 // pred_check
      %p22 = pneg %p21
    $region23: #{qwen_mlp.1} parent=1 // pred_check_branch
      %24 = sbr.rel (%p22) target = $region25
    $region24: #{qwen_mlp.1} parent=1 // pred_region
      %25 = vst [vmem:[#allocation2] sm:$0xff] 0.0
      %26 = vst [vmem:[#allocation2 + $0x8] sm:$0xff] 0.0
    $region25: #{qwen_mlp.1} parent=1 // pred_fallthru
      _
    %v27 = vld [vmem:[%s0] sm:$0xf]
    %v28 = vld [vmem:[%s0 + $0x4] sm:$0xf]
    %v29 = vld [vmem:[%s1] sm:$0xff]
    %v30 = vld [vmem:[%s1 + $0x8] sm:$0xff]
    %v31 = vld [vmem:[%s1 + $0x10] sm:$0xff]
    %v32 = vld [vmem:[%s1 + $0x18] sm:$0xff]
    %v33 = vld [vmem:[%s1 + $0x20] sm:$0xff]
    %v34 = vld [vmem:[%s1 + $0x28] sm:$0xff]
    %v35 = vld [vmem:[%s1 + $0x30] sm:$0xff]
    %v36 = vld [vmem:[%s1 + $0x38] sm:$0xff]
    %v37 = vld [vmem:[%s1 + $0x40] sm:$0xff]
    %v38 = vld [vmem:[%s1 + $0x48] sm:$0xff]
    %v39 = vld [vmem:[%s1 + $0x50] sm:$0xff]
    %v40 = vld [vmem:[%s1 + $0x58] sm:$0xff]
    %v41 = vld [vmem:[%s1 + $0x60] sm:$0xff]
    %v42 = vld [vmem:[%s1 + $0x68] sm:$0xff]
    %v43 = vld [vmem:[%s1 + $0x70] sm:$0xff]
    %v44 = vld [vmem:[%s1 + $0x78] sm:$0xff]
    %v45 = vld [vmem:[%s1 + $0x80] sm:$0xff]
    %v46 = vld [vmem:[%s1 + $0x88] sm:$0xff]
    %v47 = vld [vmem:[%s1 + $0x90] sm:$0xff]
    %v48 = vld [vmem:[%s1 + $0x98] sm:$0xff]
    %v49 = vld [vmem:[%s1 + $0xa0] sm:$0xff]
    %v50 = vld [vmem:[%s1 + $0xa8] sm:$0xff]
    %v51 = vld [vmem:[%s1 + $0xb0] sm:$0xff]
    %v52 = vld [vmem:[%s1 + $0xb8] sm:$0xff]
    %v53 = vld [vmem:[%s1 + $0xc0] sm:$0xff]
    %v54 = vld [vmem:[%s1 + $0xc8] sm:$0xff]
    %v55 = vld [vmem:[%s1 + $0xd0] sm:$0xff]
    %v56 = vld [vmem:[%s1 + $0xd8] sm:$0xff]
    %v57 = vld [vmem:[%s1 + $0xe0] sm:$0xff]
    %v58 = vld [vmem:[%s1 + $0xe8] sm:$0xff]
    %v59 = vld [vmem:[%s1 + $0xf0] sm:$0xff]
    %v60 = vld [vmem:[%s1 + $0xf8] sm:$0xff]
    %v61 = vld [vmem:[%s2] sm:$0xf]
    %v63 = vperm.slane %v61, 0
    %v64 = vperm.slane %v61, 1
    %v65 = vperm.slane %v61, 2
    %v66 = vperm.slane %v61, 3
    %v73 = vunpack.c.l.b16 %v27
    %v74 = vunpack.c.l.b16 %v28
    %v75 = vpack.c.b16 %v74, %v73
    %v109 = vunpack.c.l.b16 %v29
    %v110 = vunpack.c.h.b16 %v29
    %v111 = vunpack.c.l.b16 %v30
    %v112 = vunpack.c.h.b16 %v30
    %v113 = vunpack.c.l.b16 %v31
    %v114 = vunpack.c.h.b16 %v31
    %v115 = vunpack.c.l.b16 %v32
    %v116 = vunpack.c.h.b16 %v32
    %v117 = vunpack.c.l.b16 %v33
    %v118 = vunpack.c.h.b16 %v33
    %v119 = vunpack.c.l.b16 %v34
    %v120 = vunpack.c.h.b16 %v34
    %v121 = vunpack.c.l.b16 %v35
    %v122 = vunpack.c.h.b16 %v35
    %v123 = vunpack.c.l.b16 %v36
    %v124 = vunpack.c.h.b16 %v36
    %v125 = vunpack.c.l.b16 %v37
    %v126 = vunpack.c.h.b16 %v37
    %v127 = vunpack.c.l.b16 %v38
    %v128 = vunpack.c.h.b16 %v38
    %v129 = vunpack.c.l.b16 %v39
    %v130 = vunpack.c.h.b16 %v39
    %v131 = vunpack.c.l.b16 %v40
    %v132 = vunpack.c.h.b16 %v40
    %v133 = vunpack.c.l.b16 %v41
    %v134 = vunpack.c.h.b16 %v41
    %v135 = vunpack.c.l.b16 %v42
    %v136 = vunpack.c.h.b16 %v42
    %v137 = vunpack.c.l.b16 %v43
    %v138 = vunpack.c.h.b16 %v43
    %v139 = vunpack.c.l.b16 %v44
    %v140 = vunpack.c.h.b16 %v44
    %v141 = vunpack.c.l.b16 %v45
    %v142 = vunpack.c.h.b16 %v45
    %v143 = vunpack.c.l.b16 %v46
    %v144 = vunpack.c.h.b16 %v46
    %v145 = vunpack.c.l.b16 %v47
    %v146 = vunpack.c.h.b16 %v47
    %v147 = vunpack.c.l.b16 %v48
    %v148 = vunpack.c.h.b16 %v48
    %v149 = vunpack.c.l.b16 %v49
    %v150 = vunpack.c.h.b16 %v49
    %v151 = vunpack.c.l.b16 %v50
    %v152 = vunpack.c.h.b16 %v50
    %v153 = vunpack.c.l.b16 %v51
    %v154 = vunpack.c.h.b16 %v51
    %v155 = vunpack.c.l.b16 %v52
    %v156 = vunpack.c.h.b16 %v52
    %v157 = vunpack.c.l.b16 %v53
    %v158 = vunpack.c.h.b16 %v53
    %v159 = vunpack.c.l.b16 %v54
    %v160 = vunpack.c.h.b16 %v54
    %v161 = vunpack.c.l.b16 %v55
    %v162 = vunpack.c.h.b16 %v55
    %v163 = vunpack.c.l.b16 %v56
    %v164 = vunpack.c.h.b16 %v56
    %v165 = vunpack.c.l.b16 %v57
    %v166 = vunpack.c.h.b16 %v57
    %v167 = vunpack.c.l.b16 %v58
    %v168 = vunpack.c.h.b16 %v58
    %v169 = vunpack.c.l.b16 %v59
    %v170 = vunpack.c.h.b16 %v59
    %v171 = vunpack.c.l.b16 %v60
    %v172 = vunpack.c.h.b16 %v60
    %v173 = vpack.c.b16 %v113, %v109
    %v174 = vpack.c.b16 %v114, %v110
    %v175 = vpack.c.b16 %v115, %v111
    %v176 = vpack.c.b16 %v116, %v112
    %v177 = vpack.c.b16 %v121, %v117
    %v178 = vpack.c.b16 %v122, %v118
    %v179 = vpack.c.b16 %v123, %v119
    %v180 = vpack.c.b16 %v124, %v120
    %v181 = vpack.c.b16 %v129, %v125
    %v182 = vpack.c.b16 %v130, %v126
    %v183 = vpack.c.b16 %v131, %v127
    %v184 = vpack.c.b16 %v132, %v128
    %v185 = vpack.c.b16 %v137, %v133
    %v186 = vpack.c.b16 %v138, %v134
    %v187 = vpack.c.b16 %v139, %v135
    %v188 = vpack.c.b16 %v140, %v136
    %v189 = vpack.c.b16 %v145, %v141
    %v190 = vpack.c.b16 %v146, %v142
    %v191 = vpack.c.b16 %v147, %v143
    %v192 = vpack.c.b16 %v148, %v144
    %v193 = vpack.c.b16 %v153, %v149
    %v194 = vpack.c.b16 %v154, %v150
    %v195 = vpack.c.b16 %v155, %v151
    %v196 = vpack.c.b16 %v156, %v152
    %v197 = vpack.c.b16 %v161, %v157
    %v198 = vpack.c.b16 %v162, %v158
    %v199 = vpack.c.b16 %v163, %v159
    %v200 = vpack.c.b16 %v164, %v160
    %v201 = vpack.c.b16 %v169, %v165
    %v202 = vpack.c.b16 %v170, %v166
    %v203 = vpack.c.b16 %v171, %v167
    %v204 = vpack.c.b16 %v172, %v168
    %237 = vmatpush.bf16.msra.mxu0 %v201
    %238 = vmatpush.bf16.msra.mxu0 %v197
    %239 = vmatpush.bf16.msra.mxu0 %v193
    %240 = vmatpush.bf16.msra.mxu0 %v189
    %241 = vmatpush.bf16.msra.mxu0 %v185
    %242 = vmatpush.bf16.msra.mxu0 %v181
    %243 = vmatpush.bf16.msra.mxu0 %v177
    %244 = vmatpush.bf16.msra.mxu0 %v173
    %245 = vmatmul.bf16.gmra.mxu0 %v75
    %v246 = vpop.f32.mrf.mxu0
    %v247 = vadd.f32 %v63, %v246
    %v248 = vpop.f32.mrf.mxu0
    %v249 = vadd.f32 %v63, %v248
    %250 = vdwg.mxu0
    %251 = vmatpush.bf16.msra.mxu0 %v202
    %252 = vmatpush.bf16.msra.mxu0 %v198
    %253 = vmatpush.bf16.msra.mxu0 %v194
    %254 = vmatpush.bf16.msra.mxu0 %v190
    %255 = vmatpush.bf16.msra.mxu0 %v186
    %256 = vmatpush.bf16.msra.mxu0 %v182
    %257 = vmatpush.bf16.msra.mxu0 %v178
    %258 = vmatpush.bf16.msra.mxu0 %v174
    %259 = vmatmul.bf16.gmra.mxu0 %v75
    %v260 = vpop.f32.mrf.mxu0
    %v261 = vadd.f32 %v64, %v260
    %v262 = vpop.f32.mrf.mxu0
    %v263 = vadd.f32 %v64, %v262
    %264 = vdwg.mxu0
    %265 = vmatpush.bf16.msra.mxu0 %v203
    %266 = vmatpush.bf16.msra.mxu0 %v199
    %267 = vmatpush.bf16.msra.mxu0 %v195
    %268 = vmatpush.bf16.msra.mxu0 %v191
    %269 = vmatpush.bf16.msra.mxu0 %v187
    %270 = vmatpush.bf16.msra.mxu0 %v183
    %271 = vmatpush.bf16.msra.mxu0 %v179
    %272 = vmatpush.bf16.msra.mxu0 %v175
    %273 = vmatmul.bf16.gmra.mxu0 %v75
    %v274 = vpop.f32.mrf.mxu0
    %v275 = vadd.f32 %v65, %v274
    %v276 = vpop.f32.mrf.mxu0
    %v277 = vadd.f32 %v65, %v276
    %278 = vdwg.mxu0
    %279 = vmatpush.bf16.msra.mxu0 %v204
    %280 = vmatpush.bf16.msra.mxu0 %v200
    %281 = vmatpush.bf16.msra.mxu0 %v196
    %282 = vmatpush.bf16.msra.mxu0 %v192
    %283 = vmatpush.bf16.msra.mxu0 %v188
    %284 = vmatpush.bf16.msra.mxu0 %v184
    %285 = vmatpush.bf16.msra.mxu0 %v180
    %286 = vmatpush.bf16.msra.mxu0 %v176
    %287 = vmatmul.bf16.gmra.mxu0 %v75
    %v288 = vpop.f32.mrf.mxu0
    %v289 = vadd.f32 %v66, %v288
    %v290 = vpop.f32.mrf.mxu0
    %v291 = vadd.f32 %v66, %v290
    %292 = vdwg.mxu0
    %v293 = vxor.u32 %v275, 2147483648
    %v294 = vxor.u32 %v289, 2147483648
    %v295 = vxor.u32 %v277, 2147483648
    %v296 = vxor.u32 %v291, 2147483648
    %v297 = vmul.f32 %v293, 1.442695
    %v298 = vpow.pop %v297
    %v299 = vmul.f32 %v294, 1.442695
    %v300 = vpow.pop %v299
    %v301 = vmul.f32 %v295, 1.442695
    %v302 = vpow.pop %v301
    %v303 = vmul.f32 %v296, 1.442695
    %v304 = vpow.pop %v303
    %v305 = vadd.f32 %v298, 1.0
    %v306 = vadd.f32 %v300, 1.0
    %v307 = vadd.f32 %v302, 1.0
    %v308 = vadd.f32 %v304, 1.0
    %v309 = vrcp.pop %v305
    %v310 = vmul.f32 %v305, %v309
    %v311 = vsub.f32 1.0, %v310
    %v312 = vmul.f32 %v309, %v311
    %v313 = vadd.f32 %v309, %v312
    %vm314 = vweird.f32 %v305
    %vm315 = vweird.f32 %v309
    %vm316 = vmor %vm314, %vm315
    %v317 = vsel %vm316, %v309, %v313
    %v318 = vand.u32 2147483647, %v305
    %vm319 = vcmp.eq.f32.partialorder %v318, 8.507059e+37
    %v320 = vand.u32 %v305, 2147483648
    %v321 = vor.u32 1.1754944e-38, %v320
    %v322 = vsel %vm319, %v321, %v317
    %v323 = vmul.f32 1.0, %v322
    %v324 = vrcp.pop %v306
    %v325 = vmul.f32 %v306, %v324
    %v326 = vsub.f32 1.0, %v325
    %v327 = vmul.f32 %v324, %v326
    %v328 = vadd.f32 %v324, %v327
    %vm329 = vweird.f32 %v306
    %vm330 = vweird.f32 %v324
    %vm331 = vmor %vm329, %vm330
    %v332 = vsel %vm331, %v324, %v328
    %v333 = vand.u32 2147483647, %v306
    %vm334 = vcmp.eq.f32.partialorder %v333, 8.507059e+37
    %v335 = vand.u32 %v306, 2147483648
    %v336 = vor.u32 1.1754944e-38, %v335
    %v337 = vsel %vm334, %v336, %v332
    %v338 = vmul.f32 1.0, %v337
    %v339 = vrcp.pop %v307
    %v340 = vmul.f32 %v307, %v339
    %v341 = vsub.f32 1.0, %v340
    %v342 = vmul.f32 %v339, %v341
    %v343 = vadd.f32 %v339, %v342
    %vm344 = vweird.f32 %v307
    %vm345 = vweird.f32 %v339
    %vm346 = vmor %vm344, %vm345
    %v347 = vsel %vm346, %v339, %v343
    %v348 = vand.u32 2147483647, %v307
    %vm349 = vcmp.eq.f32.partialorder %v348, 8.507059e+37
    %v350 = vand.u32 %v307, 2147483648
    %v351 = vor.u32 1.1754944e-38, %v350
    %v352 = vsel %vm349, %v351, %v347
    %v353 = vmul.f32 1.0, %v352
    %v354 = vrcp.pop %v308
    %v355 = vmul.f32 %v308, %v354
    %v356 = vsub.f32 1.0, %v355
    %v357 = vmul.f32 %v354, %v356
    %v358 = vadd.f32 %v354, %v357
    %vm359 = vweird.f32 %v308
    %vm360 = vweird.f32 %v354
    %vm361 = vmor %vm359, %vm360
    %v362 = vsel %vm361, %v354, %v358
    %v363 = vand.u32 2147483647, %v308
    %vm364 = vcmp.eq.f32.partialorder %v363, 8.507059e+37
    %v365 = vand.u32 %v308, 2147483648
    %v366 = vor.u32 1.1754944e-38, %v365
    %v367 = vsel %vm364, %v366, %v362
    %v368 = vmul.f32 1.0, %v367
    %v369 = vmul.f32 %v275, %v323
    %v370 = vmul.f32 %v289, %v338
    %v371 = vmul.f32 %v277, %v353
    %v372 = vmul.f32 %v291, %v368
    %v373 = vmul.f32 %v247, %v369
    %v374 = vmul.f32 %v261, %v370
    %v375 = vmul.f32 %v249, %v371
    %v376 = vmul.f32 %v263, %v372
    %v377 = vld [vmem:[#allocation2] sm:$0xff]
    %v378 = vld [vmem:[#allocation2 + $0x8] sm:$0xff]
    %v379 = vpack.c.bf16 %v375, %v373
    %v380 = vpack.c.bf16 %v376, %v374
    %v381 = vld [vmem:[%s3] sm:$0xf]
    %v382 = vld [vmem:[%s3 + $0x4] sm:$0xf]
    %v383 = vld [vmem:[%s3 + $0x8] sm:$0xf]
    %v384 = vld [vmem:[%s3 + $0xc] sm:$0xf]
    %v385 = vld [vmem:[%s3 + $0x10] sm:$0xf]
    %v386 = vld [vmem:[%s3 + $0x14] sm:$0xf]
    %v387 = vld [vmem:[%s3 + $0x18] sm:$0xf]
    %v388 = vld [vmem:[%s3 + $0x1c] sm:$0xf]
    %v389 = vld [vmem:[%s3 + $0x20] sm:$0xf]
    %v390 = vld [vmem:[%s3 + $0x24] sm:$0xf]
    %v391 = vld [vmem:[%s3 + $0x28] sm:$0xf]
    %v392 = vld [vmem:[%s3 + $0x2c] sm:$0xf]
    %v393 = vld [vmem:[%s3 + $0x30] sm:$0xf]
    %v394 = vld [vmem:[%s3 + $0x34] sm:$0xf]
    %v395 = vld [vmem:[%s3 + $0x38] sm:$0xf]
    %v396 = vld [vmem:[%s3 + $0x3c] sm:$0xf]
    %v397 = vld [vmem:[%s3 + $0x40] sm:$0xf]
    %v398 = vld [vmem:[%s3 + $0x44] sm:$0xf]
    %v399 = vld [vmem:[%s3 + $0x48] sm:$0xf]
    %v400 = vld [vmem:[%s3 + $0x4c] sm:$0xf]
    %v401 = vld [vmem:[%s3 + $0x50] sm:$0xf]
    %v402 = vld [vmem:[%s3 + $0x54] sm:$0xf]
    %v403 = vld [vmem:[%s3 + $0x58] sm:$0xf]
    %v404 = vld [vmem:[%s3 + $0x5c] sm:$0xf]
    %v405 = vld [vmem:[%s3 + $0x60] sm:$0xf]
    %v406 = vld [vmem:[%s3 + $0x64] sm:$0xf]
    %v407 = vld [vmem:[%s3 + $0x68] sm:$0xf]
    %v408 = vld [vmem:[%s3 + $0x6c] sm:$0xf]
    %v409 = vld [vmem:[%s3 + $0x70] sm:$0xf]
    %v410 = vld [vmem:[%s3 + $0x74] sm:$0xf]
    %v411 = vld [vmem:[%s3 + $0x78] sm:$0xf]
    %v412 = vld [vmem:[%s3 + $0x7c] sm:$0xf]
    %v445 = vunpack.c.l.b16 %v381
    %v446 = vunpack.c.l.b16 %v382
    %v447 = vunpack.c.l.b16 %v383
    %v448 = vunpack.c.l.b16 %v384
    %v449 = vunpack.c.l.b16 %v385
    %v450 = vunpack.c.l.b16 %v386
    %v451 = vunpack.c.l.b16 %v387
    %v452 = vunpack.c.l.b16 %v388
    %v453 = vunpack.c.l.b16 %v389
    %v454 = vunpack.c.l.b16 %v390
    %v455 = vunpack.c.l.b16 %v391
    %v456 = vunpack.c.l.b16 %v392
    %v457 = vunpack.c.l.b16 %v393
    %v458 = vunpack.c.l.b16 %v394
    %v459 = vunpack.c.l.b16 %v395
    %v460 = vunpack.c.l.b16 %v396
    %v461 = vunpack.c.l.b16 %v397
    %v462 = vunpack.c.l.b16 %v398
    %v463 = vunpack.c.l.b16 %v399
    %v464 = vunpack.c.l.b16 %v400
    %v465 = vunpack.c.l.b16 %v401
    %v466 = vunpack.c.l.b16 %v402
    %v467 = vunpack.c.l.b16 %v403
    %v468 = vunpack.c.l.b16 %v404
    %v469 = vunpack.c.l.b16 %v405
    %v470 = vunpack.c.l.b16 %v406
    %v471 = vunpack.c.l.b16 %v407
    %v472 = vunpack.c.l.b16 %v408
    %v473 = vunpack.c.l.b16 %v409
    %v474 = vunpack.c.l.b16 %v410
    %v475 = vunpack.c.l.b16 %v411
    %v476 = vunpack.c.l.b16 %v412
    %v477 = vpack.c.b16 %v446, %v445
    %v478 = vpack.c.b16 %v448, %v447
    %v479 = vpack.c.b16 %v450, %v449
    %v480 = vpack.c.b16 %v452, %v451
    %v481 = vpack.c.b16 %v454, %v453
    %v482 = vpack.c.b16 %v456, %v455
    %v483 = vpack.c.b16 %v458, %v457
    %v484 = vpack.c.b16 %v460, %v459
    %v485 = vpack.c.b16 %v462, %v461
    %v486 = vpack.c.b16 %v464, %v463
    %v487 = vpack.c.b16 %v466, %v465
    %v488 = vpack.c.b16 %v468, %v467
    %v489 = vpack.c.b16 %v470, %v469
    %v490 = vpack.c.b16 %v472, %v471
    %v491 = vpack.c.b16 %v474, %v473
    %v492 = vpack.c.b16 %v476, %v475
    %509 = vmatpush.bf16.msra.mxu0 %v484
    %510 = vmatpush.bf16.msra.mxu0 %v483
    %511 = vmatpush.bf16.msra.mxu0 %v482
    %512 = vmatpush.bf16.msra.mxu0 %v481
    %513 = vmatpush.bf16.msra.mxu0 %v480
    %514 = vmatpush.bf16.msra.mxu0 %v479
    %515 = vmatpush.bf16.msra.mxu0 %v478
    %516 = vmatpush.bf16.msra.mxu0 %v477
    %517 = vmatmul.bf16.gmra.mxu0 %v379
    %v518 = vpop.f32.mrf.mxu0
    %v519 = vadd.f32 0.0, %v518
    %v520 = vpop.f32.mrf.mxu0
    %v521 = vadd.f32 0.0, %v520
    %522 = vdwg.mxu0
    %523 = vmatpush.bf16.msra.mxu0 %v492
    %524 = vmatpush.bf16.msra.mxu0 %v491
    %525 = vmatpush.bf16.msra.mxu0 %v490
    %526 = vmatpush.bf16.msra.mxu0 %v489
    %527 = vmatpush.bf16.msra.mxu0 %v488
    %528 = vmatpush.bf16.msra.mxu0 %v487
    %529 = vmatpush.bf16.msra.mxu0 %v486
    %530 = vmatpush.bf16.msra.mxu0 %v485
    %531 = vmatmul.bf16.gmra.mxu0 %v380
    %v532 = vpop.f32.mrf.mxu0
    %v533 = vadd.f32 %v519, %v532
    %v534 = vpop.f32.mrf.mxu0
    %v535 = vadd.f32 %v521, %v534
    %536 = vdwg.mxu0
    %v537 = vadd.f32 %v377, %v533
    %v538 = vadd.f32 %v378, %v535
    %539 = vst [vmem:[#allocation2] sm:$0xff] %v537
    %540 = vst [vmem:[#allocation2 + $0x8] sm:$0xff] %v538
    // Predicated region
    $region26: #{qwen_mlp.1} parent=1 // pred_check
      %p541 = pneg %p21
    $region27: #{qwen_mlp.1} parent=1 // pred_check_branch
      %543 = sbr.rel (%p541) target = $region29
    $region28: #{qwen_mlp.1} parent=1 // pred_region
      %v544 = vld [vmem:[#allocation2] sm:$0xff]
      %v545 = vld [vmem:[#allocation2 + $0x8] sm:$0xff]
      %v546 = vld [vmem:[%s4] sm:$0x1]
      %v548 = vperm.slane %v546, 0
      %v550 = vadd.f32 %v544, %v548
      %v551 = vadd.f32 %v545, %v548
      %552 = vst [vmem:[#allocation3] sm:$0xff] %v550
      %553 = vst [vmem:[#allocation3 + $0x8] sm:$0xff] %v551
    $region29: #{qwen_mlp.1} parent=1 // pred_fallthru
      _
    // Predicated region
    $region30: #{qwen_mlp.1} parent=1 // pred_check
      _
    $region31: #{qwen_mlp.1} parent=1 // pred_check_branch
      %555 = sbr.rel (0) target = $region33
    $region32: #{qwen_mlp.1} parent=1 // pred_region
      %557 = vsyncadd [#allocation4], 0
      %s558 = sshll.u32 [#allocation3], 4
      %s559 = int_to_ptr.vmem [resolvable:$true] %s558
      %s560 = sshll.u32 %s5, 4
      %s561 = int_to_ptr.hbm [resolvable:$true] %s560
      %566 = dma.vmem_to_hbm [thread:$0]  %s559, 256, %s561, [#allocation4], 128, 128, 8
    $region33: #{qwen_mlp.1} parent=1 // pred_fallthru
      _
    // Predicated region
    $region34: #{qwen_mlp.1} parent=1 // pred_check
      _
    $region35: #{qwen_mlp.1} parent=1 // pred_check_branch
      %568 = sbr.rel (0) target = $region37
    $region36: #{qwen_mlp.1} parent=1 // pred_region
      %570 = dma.done [#allocation4], 256
    $region37: #{qwen_mlp.1} parent=1 // pred_fallthru
      _
    %571 = vsyncpa [#allocation4], 1

</llo_original>
